<compile_context>
chip_gen: v7x
topology: tpu7x:2x2x1
jax: 0.10.0
libtpu: 0.0.40
codegen_flags: <defaults>
</compile_context>

<pallas_src>
import functools

import jax
import jax.numpy as jnp
from jax.experimental import pallas as pl
from jax.experimental.pallas import tpu as pltpu


def _round_up(x, m):
    return (x + m - 1) // m * m


def _dice_loss_kernel(logits_ref, targets_ref, loss_ref, *, alpha, gamma):
    # logits_ref: (tile_n, C) in VMEM (possibly bf16), targets_ref: (tile_n, 1) int32,
    # loss_ref: (tile_n, 1) f32 per-row loss.
    logits = logits_ref[...].astype(jnp.float32)          # cast in VMEM; HBM traffic stays narrow
    tgt = targets_ref[...]                                 # (tile_n, 1) int32
    tn, c = logits.shape

    # numerically stable softmax pieces along the class (lane) axis
    m = jnp.max(logits, axis=1, keepdims=True)             # (tile_n, 1)
    e = jnp.exp(logits - m)                                 # (tile_n, C)  -- EUP
    denom = jnp.sum(e, axis=1, keepdims=True)               # (tile_n, 1)

    # gather the target-class numerator via a one-hot select (no dynamic gather on vregs);
    # full probs array is never formed.
    col = jax.lax.broadcasted_iota(jnp.int32, (tn, c), 1)   # (tile_n, C)
    e_tgt = jnp.sum(jnp.where(col == tgt, e, 0.0), axis=1, keepdims=True)   # (tile_n, 1)

    # normalize only the (tile_n, 1) column (exact reciprocal: cheap here, keeps 1e-5 tol)
    p = e_tgt * pl.reciprocal(denom, approx=False)

    # self-adjusting dice loss; skip pow for the common alpha cases
    if alpha == 0.0:
        pf = p
    elif alpha == 1.0:
        pf = (1.0 - p) * p
    elif float(alpha).is_integer():
        pf = ((1.0 - p) ** int(alpha)) * p                  # integer_pow -> pure multiplies
    else:
        pf = ((1.0 - p) ** alpha) * p

    loss_ref[...] = 1.0 - (2.0 * pf + gamma) / (pf + 1.0 + gamma)


def self_adj_dice_loss(logits, targets, *, alpha=1.0, gamma=1.0, reduction="mean",
                       tile_n=None, vmem_limit_bytes=None):
    """logits: (N, C) float (f32/bf16/f16), targets: (N,) int in [0, C-1]."""
    if reduction not in ("mean", "sum", "none", None):
        raise NotImplementedError(f"Reduction `{reduction}` is not supported.")

    n, c = logits.shape
    itemsize = jnp.dtype(logits.dtype).itemsize

    # Pick tile rows so 2x (double-buffered) input tiles stay under ~half of the
    # smallest default scoped-VMEM limit (v5e: 16 MiB).  Re-derive per C / dtype.
    if tile_n is None:
        budget_bytes = 3 * 1024 * 1024                      # per logits tile
        rows = budget_bytes // max(1, c * itemsize)
        tile_n = int(max(8, min(2048, rows)))
    tile_n = max(8, min(_round_up(n, 8), _round_up(int(tile_n), 8)))

    num_tiles = pl.cdiv(n, tile_n)                          # ragged edge handled by Pallas

    tgt2d = targets.astype(jnp.int32).reshape(n, 1)

    kernel = functools.partial(_dice_loss_kernel, alpha=float(alpha), gamma=float(gamma))

    cp_kwargs = dict(dimension_semantics=("parallel",))      # independent tiles -> megacore-friendly
    if vmem_limit_bytes is not None:
        cp_kwargs["vmem_limit_bytes"] = int(vmem_limit_bytes)

    loss = pl.pallas_call(
        kernel,
        out_shape=jax.ShapeDtypeStruct((n, 1), jnp.float32),
        grid=(num_tiles,),
        in_specs=[
            pl.BlockSpec((tile_n, c), lambda i: (i, 0)),     # logits tile: full C, tile_n rows
            pl.BlockSpec((tile_n, 1), lambda i: (i, 0)),     # targets column tile
        ],
        out_specs=pl.BlockSpec((tile_n, 1), lambda i: (i, 0)),
        compiler_params=pltpu.CompilerParams(**cp_kwargs),
    )(logits, tgt2d)

    if reduction == "mean":
        return jnp.mean(loss)
    if reduction == "sum":
        return jnp.sum(loss)
    return loss   # (N, 1), matching torch.gather output shape for reduction='none'/None


def _reference(logits, targets, alpha=1.0, gamma=1.0, reduction="mean"):
    probs = jax.nn.softmax(logits.astype(jnp.float32), axis=1)
    p = jnp.take_along_axis(probs, targets.reshape(-1, 1).astype(jnp.int32), axis=1)
    pf = ((1.0 - p) ** alpha) * p
    loss = 1.0 - (2.0 * pf + gamma) / (pf + 1.0 + gamma)
    if reduction == "mean":
        return loss.mean()
    if reduction == "sum":
        return loss.sum()
    return loss


if __name__ == "__main__":
    key = jax.random.PRNGKey(0)
    k1, k2, k3, k4 = jax.random.split(key, 4)

    # Small smoke-test shapes consistent with the module: batch N=8, classes C=32.
    N, C = 8, 32
    logits = jax.random.normal(k1, (N, C), dtype=jnp.float32)
    targets = jax.random.randint(k2, (N,), 0, C, dtype=jnp.int32)

    loss = jax.block_until_ready(
        self_adj_dice_loss(logits, targets, alpha=1.0, gamma=1.0, reduction="mean"))
    ref = _reference(logits, targets, 1.0, 1.0, "mean")
    assert jnp.allclose(loss, ref, atol=1e-5, rtol=1e-5), (loss, ref)

    # Ragged N (not a multiple of the tile), bf16 logits passed straight through,
    # multi-tile grid, integer alpha != 1, reduction='none'.
    N2, C2 = 20, 48
    logits2 = jax.random.normal(k3, (N2, C2), dtype=jnp.bfloat16)
    targets2 = jax.random.randint(k4, (N2,), 0, C2, dtype=jnp.int32)
    loss2 = jax.block_until_ready(
        self_adj_dice_loss(logits2, targets2, alpha=2.0, gamma=0.5, reduction="none", tile_n=8))
    ref2 = _reference(logits2, targets2, 2.0, 0.5, "none")
    assert loss2.shape == (N2, 1)
    assert jnp.allclose(loss2, ref2, atol=2e-3, rtol=2e-3), (loss2, ref2)

    # sum reduction on the ragged / bf16 case
    loss3 = jax.block_until_ready(
        self_adj_dice_loss(logits2, targets2, alpha=1.0, gamma=1.0, reduction="sum", tile_n=8))
    ref3 = _reference(logits2, targets2, 1.0, 1.0, "sum")
    assert jnp.allclose(loss3, ref3, atol=2e-3, rtol=2e-3), (loss3, ref3)

    print("KERNEL_OK")
</pallas_src>

<mosaic_0001>
module attributes {stable_mosaic.version = 11 : i64} {
  func.func @_dice_loss_kernel(%arg0: i32, %arg1: memref<8x32xf32, #tpu.memory_space<vmem>>, %arg2: memref<8x1xi32, #tpu.memory_space<vmem>>, %arg3: memref<8x1xf32, #tpu.memory_space<vmem>>) attributes {dimension_semantics = [#tpu.dimension_semantics<parallel>], iteration_bounds = array<i64: 1>, scalar_prefetch = 0 : i64, scratch_operands = 0 : i64, tpu.core_type = #tpu.core_type<tc>, window_params = [{transform_indices = @transform_0, window_bounds = array<i64: 8, 32>}, {transform_indices = @transform_1, window_bounds = array<i64: 8, 1>}, {transform_indices = @transform_2, window_bounds = array<i64: 8, 1>}]} {
    %c0 = arith.constant 0 : index
    %c0_0 = arith.constant 0 : index
    %0 = vector.load %arg1[%c0, %c0_0] : memref<8x32xf32, #tpu.memory_space<vmem>>, vector<8x32xf32>
    %c0_1 = arith.constant 0 : index
    %c0_2 = arith.constant 0 : index
    %1 = vector.load %arg2[%c0_1, %c0_2] : memref<8x1xi32, #tpu.memory_space<vmem>>, vector<8x1xi32>
    %cst = arith.constant dense<0xFF800000> : vector<8xf32>
    %2 = vector.multi_reduction <maximumf>, %0, %cst [1] : vector<8x32xf32> to vector<8xf32>
    %3 = vector.shape_cast %2 : vector<8xf32> to vector<8x1xf32>
    %4 = vector.broadcast %3 : vector<8x1xf32> to vector<8x32xf32>
    %5 = arith.subf %0, %4 : vector<8x32xf32>
    %6 = math.exp %5 : vector<8x32xf32>
    %cst_3 = arith.constant dense<0.000000e+00> : vector<8xf32>
    %7 = vector.multi_reduction <add>, %6, %cst_3 [1] : vector<8x32xf32> to vector<8xf32>
    %8 = vector.shape_cast %7 : vector<8xf32> to vector<8x1xf32>
    %9 = tpu.iota {dimensions = array<i32: 1>} : vector<8x32xi32>
    %10 = vector.broadcast %1 : vector<8x1xi32> to vector<8x32xi32>
    %11 = arith.cmpi eq, %9, %10 : vector<8x32xi32>
    %cst_4 = arith.constant 0.000000e+00 : f32
    %12 = vector.broadcast %cst_4 : f32 to vector<8x32xf32>
    %13 = arith.select %11, %6, %12 : vector<8x32xi1>, vector<8x32xf32>
    %cst_5 = arith.constant dense<0.000000e+00> : vector<8xf32>
    %14 = vector.multi_reduction <add>, %13, %cst_5 [1] : vector<8x32xf32> to vector<8xf32>
    %15 = vector.shape_cast %14 : vector<8xf32> to vector<8x1xf32>
    %16 = tpu.reciprocal %8 : vector<8x1xf32> -> vector<8x1xf32>
    %17 = arith.mulf %15, %16 : vector<8x1xf32>
    %cst_6 = arith.constant 1.000000e+00 : f32
    %18 = vector.broadcast %cst_6 : f32 to vector<8x1xf32>
    %19 = arith.subf %18, %17 : vector<8x1xf32>
    %20 = arith.mulf %19, %17 : vector<8x1xf32>
    %cst_7 = arith.constant 2.000000e+00 : f32
    %21 = vector.broadcast %cst_7 : f32 to vector<8x1xf32>
    %22 = arith.mulf %21, %20 : vector<8x1xf32>
    %cst_8 = arith.constant 1.000000e+00 : f32
    %23 = vector.broadcast %cst_8 : f32 to vector<8x1xf32>
    %24 = arith.addf %22, %23 : vector<8x1xf32>
    %cst_9 = arith.constant 1.000000e+00 : f32
    %25 = vector.broadcast %cst_9 : f32 to vector<8x1xf32>
    %26 = arith.addf %20, %25 : vector<8x1xf32>
    %cst_10 = arith.constant 1.000000e+00 : f32
    %27 = vector.broadcast %cst_10 : f32 to vector<8x1xf32>
    %28 = arith.addf %26, %27 : vector<8x1xf32>
    %29 = arith.divf %24, %28 : vector<8x1xf32>
    %cst_11 = arith.constant 1.000000e+00 : f32
    %30 = vector.broadcast %cst_11 : f32 to vector<8x1xf32>
    %31 = arith.subf %30, %29 : vector<8x1xf32>
    %c0_12 = arith.constant 0 : index
    %c0_13 = arith.constant 0 : index
    %32 = vector.load %arg3[%c0_12, %c0_13] : memref<8x1xf32, #tpu.memory_space<vmem>>, vector<8x1xf32>
    tpu.vector_store %arg3[%c0_12, %c0_13], %31 {strides = array<i32>} : memref<8x1xf32, #tpu.memory_space<vmem>>, vector<8x1xf32>,
    return
  }
  func.func @transform_0(%arg0: i32) -> (i32, i32) {
    %c0_i32 = arith.constant 0 : i32
    %c0_i32_0 = arith.constant 0 : i32
    return %arg0, %c0_i32 : i32, i32
  }
  func.func @transform_1(%arg0: i32) -> (i32, i32) {
    %c0_i32 = arith.constant 0 : i32
    %c0_i32_0 = arith.constant 0 : i32
    return %arg0, %c0_i32 : i32, i32
  }
  func.func @transform_2(%arg0: i32) -> (i32, i32) {
    %c0_i32 = arith.constant 0 : i32
    %c0_i32_0 = arith.constant 0 : i32
    return %arg0, %c0_i32 : i32, i32
  }
}

</mosaic_0001>

<llo_original>
// kernel: tpu_custom_call.1
$region0: #{tpu_custom_call.1}
  #allocation0 [shape = 'u32[]', space=smem, size = 0x4, offset = 0x4, fixed_abs, tag = 'smem constant byte address 0x4 - core index']
  #allocation1 [shape = 'u32[144,128]{1,0:T(1,128)}', space=vmem, size = 0x12000, scoped, tag = 'internal scratch']
  %s0 = inlined_call_operand.vmem [shape: f32[8,32], index: 0, kind: input, shape index: {}]
  %s1 = inlined_call_operand.vmem [shape: s32[8,1], index: 1, kind: input, shape index: {}]
  %s2 = inlined_call_operand.vmem [shape: f32[8,1], index: 2, kind: output, shape index: {}]
  %s3 = sld [smem:[#allocation0]]
  $region18: #{tpu_custom_call.1} parent=0
    _
  %s5 = ssub.s32 1, %s3
  %s6 = scalar_select 0, %s5, %s3
  // Predicated region
  $region2: #{tpu_custom_call.1} parent=0 // pred_check
    _
  $region3: #{tpu_custom_call.1} parent=0 // pred_check_branch
    %8 = sbr.rel (0) target = $region5
  $region4: #{tpu_custom_call.1} parent=0 // pred_region
    _
  $region5: #{tpu_custom_call.1} parent=0 // pred_fallthru
    _
  // Predicated region
  $region6: #{tpu_custom_call.1} parent=0 // pred_check
    _
  $region7: #{tpu_custom_call.1} parent=0 // pred_check_branch
    %10 = sbr.rel (0) target = $region9
  $region8: #{tpu_custom_call.1} parent=0 // pred_region
    _
  $region9: #{tpu_custom_call.1} parent=0 // pred_fallthru
    _
  %v11 = vld [vmem:[%s0] sm:$0xff]
  %v12 = vld [vmem:[%s1] sm:$0xff]
  %vm13 = vcmask 261120
  %v14 = vsel %vm13, %v11, -inf
  %15 = vmax.xlane.f32.xlu0 %v14
  %v16 = vpop.xlane.xlu0 %15
  %v17 = vsub.f32 %v11, %v16
  %v18 = vmul.f32 %v17, 1.442695
  %v19 = vpow.pop %v18
  %v20 = vsel %vm13, %v19, 0.0
  %21 = vadd.xlane.f32.xlu0 %v20
  %v22 = vpop.xlane.xlu0 %21
  %v23 = vlaneseq
  %v24 = vand.u32 %v23, 127
  %25 = vset.pattern.permute.xlu0 0
  %26 = vperm.xlu0 %25, %v12
  %v27 = vpop.permute.xlu0 %26
  %vm28 = vcmp.eq.s32.totalorder %v24, %v27
  %v29 = vsel %vm28, %v19, 0.0
  %v30 = vsel %vm13, %v29, 0.0
  %31 = vadd.xlane.f32.xlu0 %v30
  %v32 = vpop.xlane.xlu0 %31
  %v33 = vrcp.pop %v22
  %v34 = vmul.f32 %v32, %v33
  %v35 = vsub.f32 1.0, %v34
  %v36 = vmul.f32 %v35, %v34
  %v37 = vmul.f32 %v36, 2.0
  %v38 = vadd.f32 %v37, 1.0
  %v39 = vadd.f32 %v36, 1.0
  %v40 = vadd.f32 %v39, 1.0
  %v41 = vrcp.pop %v40
  %v42 = vmul.f32 %v38, %v41
  %v43 = vsub.f32 1.0, %v42
  %vm44 = vcmask 7168
  %45 = vst.msk [vmem:[%s2] sm:$0xff] %vm44, %v43
  // Predicated region
  $region10: #{tpu_custom_call.1} parent=0 // pred_check
    _
  $region11: #{tpu_custom_call.1} parent=0 // pred_check_branch
    %47 = sbr.rel (0) target = $region13
  $region12: #{tpu_custom_call.1} parent=0 // pred_region
    _
  $region13: #{tpu_custom_call.1} parent=0 // pred_fallthru
    _
  // Predicated region
  $region14: #{tpu_custom_call.1} parent=0 // pred_check
    _
  $region15: #{tpu_custom_call.1} parent=0 // pred_check_branch
    %49 = sbr.rel (0) target = $region17
  $region16: #{tpu_custom_call.1} parent=0 // pred_region
    _
  $region17: #{tpu_custom_call.1} parent=0 // pred_fallthru
    _

</llo_original>
